<compile_context>
chip_gen: v7x
topology: tpu7x:2x2x1
jax: 0.10.0
libtpu: 0.0.40
codegen_flags: <defaults>
</compile_context>

<pallas_src>
import functools
import math

import jax
import jax.numpy as jnp
from jax.experimental import pallas as pl
from jax.experimental.pallas import tpu as pltpu

_EPS = 1e-12                    # F.normalize default eps
_TARGET_BLOCK_BYTES = 2 << 20   # ~2 MiB blocks: amortize ~0.35us/grid-step overhead
                                # while 4x double-buffering stays far under scoped VMEM.


def _largest_divisor_leq(n: int, cap: int) -> int:
    cap = max(1, min(cap, n))
    for d in range(cap, 0, -1):
        if n % d == 0:
            return d
    return 1


def _round_up(n: int, m: int) -> int:
    return -(-n // m) * m


# ----------------------------------------------------------------------------
# Kernels (native-dtype loads/stores, f32 internal math, gamma pre-scaled)
# ----------------------------------------------------------------------------
def _rms_norm_cf_kernel(x_ref, g_ref, *rest, eps, has_bias):
    """channel_first: block (Bt, C, TS); normalize over axis=1 (sublanes)."""
    if has_bias:
        b_ref, o_ref = rest
    else:
        (o_ref,) = rest
    x = x_ref[...].astype(jnp.float32)                  # (Bt, C, TS)
    ss = jnp.sum(x * x, axis=1, keepdims=True)           # (Bt, 1, TS)
    inv = jax.lax.rsqrt(jnp.maximum(ss, eps * eps))       # == 1 / max(||x||, eps)
    y = x * inv * g_ref[...]                              # gamma already * sqrt(C)
    if has_bias:
        y = y + b_ref[...]
    o_ref[...] = y.astype(o_ref.dtype)


def _rms_norm_cl_kernel(x_ref, g_ref, *rest, eps, has_bias):
    """channel_last: block (TM, C); normalize over the last axis (lanes)."""
    if has_bias:
        b_ref, o_ref = rest
    else:
        (o_ref,) = rest
    x = x_ref[...].astype(jnp.float32)                   # (TM, C)
    ss = jnp.sum(x * x, axis=-1, keepdims=True)           # (TM, 1)
    inv = jax.lax.rsqrt(jnp.maximum(ss, eps * eps))
    y = x * inv * g_ref[...]
    if has_bias:
        y = y + b_ref[...]
    o_ref[...] = y.astype(o_ref.dtype)


# ----------------------------------------------------------------------------
# Wrappers
# ----------------------------------------------------------------------------
def _rms_norm_channel_first(x, gamma, bias, eps):
    B, C = x.shape[0], x.shape[1]
    spatial = x.shape[2:]
    S = math.prod(spatial) if spatial else 1
    xr = x.reshape(B, C, S)
    itemsize = x.dtype.itemsize

    scale = float(C) ** 0.5
    g = (gamma.astype(jnp.float32) * scale).reshape(1, C, 1)   # fold sqrt(C) into gamma
    has_bias = bias is not None

    # ---- tile sizing from a VMEM byte budget --------------------------------
    bytes_per_col = C * itemsize                 # one spatial column, all channels
    if S * bytes_per_col >= _TARGET_BLOCK_BYTES:
        # Large spatial: one batch element per block, 128-aligned lane tile.
        # Ragged last block is fine: the reduce is per-lane over sublanes.
        bt = 1
        tile_s = max(128, (_TARGET_BLOCK_BYTES // bytes_per_col) // 128 * 128)
    else:
        # Small spatial (latent stages): take the whole spatial extent and pack
        # several batch elements per block; keep >=2 batch steps when B >= 2 so
        # both v7x TensorCores get work.
        tile_s = S
        budget_bt = max(1, _TARGET_BLOCK_BYTES // max(1, S * bytes_per_col))
        cap = budget_bt if B < 2 else min(budget_bt, max(1, B // 2))
        bt = _largest_divisor_leq(B, cap)

    n_b = B // bt
    n_s = pl.cdiv(S, tile_s)
    if n_b * n_s < 2 and S >= 256:               # keep both v7x cores busy
        tile_s = max(128, _round_up(tile_s // 2, 128))
        n_s = pl.cdiv(S, tile_s)
    grid = (n_b, n_s)

    block_bytes = bt * C * tile_s * itemsize     # in block == out block size
    vmem_limit = int(min(48 << 20, max(32 << 20, 4 * block_bytes + (2 << 20))))

    in_specs = [
        pl.BlockSpec((bt, C, tile_s), lambda b, s: (b, 0, s)),
        pl.BlockSpec((1, C, 1), lambda b, s: (0, 0, 0)),       # resident gamma
    ]
    args = [xr, g]
    if has_bias:
        in_specs.append(pl.BlockSpec((1, C, 1), lambda b, s: (0, 0, 0)))
        args.append(bias.astype(jnp.float32).reshape(1, C, 1))

    kern = functools.partial(_rms_norm_cf_kernel, eps=eps, has_bias=has_bias)
    out = pl.pallas_call(
        kern,
        out_shape=jax.ShapeDtypeStruct((B, C, S), x.dtype),
        grid=grid,
        in_specs=in_specs,
        out_specs=pl.BlockSpec((bt, C, tile_s), lambda b, s: (b, 0, s)),
        compiler_params=pltpu.CompilerParams(
            dimension_semantics=("parallel", "parallel"),
            vmem_limit_bytes=vmem_limit),
    )(*args)
    return out.reshape(x.shape)


def _rms_norm_channel_last(x, gamma, bias, eps):
    C = x.shape[-1]
    lead = x.shape[:-1]
    M = math.prod(lead) if lead else 1
    xr = x.reshape(M, C)
    itemsize = x.dtype.itemsize

    scale = float(C) ** 0.5
    g = (gamma.astype(jnp.float32) * scale).reshape(1, C)
    has_bias = bias is not None

    # ---- tile sizing from a VMEM byte budget --------------------------------
    row_bytes = max(1, C * itemsize)
    tile_m = max(8, (_TARGET_BLOCK_BYTES // row_bytes) // 8 * 8)
    if tile_m >= M:
        tile_m = M                               # full extent: always a legal block
        if M >= 512:                             # split so both v7x cores get work
            tile_m = _round_up(pl.cdiv(M, 2), 8)
    grid = (pl.cdiv(M, tile_m),)

    block_bytes = tile_m * C * itemsize
    vmem_limit = int(min(48 << 20, max(32 << 20, 4 * block_bytes + (2 << 20))))

    # NOTE(perf): for C < 128 the stores here are lane-sparse (masked vst); a
    # lane-dense G=(128//C) grouped view needs an in-kernel lane-splitting
    # reshape/relayout and is intentionally left out to keep lowering robust.
    in_specs = [
        pl.BlockSpec((tile_m, C), lambda i: (i, 0)),
        pl.BlockSpec((1, C), lambda i: (0, 0)),
    ]
    args = [xr, g]
    if has_bias:
        in_specs.append(pl.BlockSpec((1, C), lambda i: (0, 0)))
        args.append(bias.astype(jnp.float32).reshape(1, C))

    kern = functools.partial(_rms_norm_cl_kernel, eps=eps, has_bias=has_bias)
    out = pl.pallas_call(
        kern,
        out_shape=jax.ShapeDtypeStruct((M, C), x.dtype),
        grid=grid,
        in_specs=in_specs,
        out_specs=pl.BlockSpec((tile_m, C), lambda i: (i, 0)),
        compiler_params=pltpu.CompilerParams(
            dimension_semantics=("parallel",),
            vmem_limit_bytes=vmem_limit),
    )(*args)
    return out.reshape(x.shape)


def rms_norm(x, gamma, bias=None, channel_first=True, eps=_EPS):
    """Pallas RMS_norm.forward.

    x:     (B, C, *spatial) if channel_first else (..., C); dtype preserved.
    gamma: any shape of size C (e.g. (C,1,1), (C,1,1,1) or (C,)).
    bias:  optional, same size C (module default bias=False -> None).
    """
    if x.dtype not in (jnp.float32, jnp.bfloat16, jnp.float16):
        x = x.astype(jnp.float32)
    if channel_first:
        return _rms_norm_channel_first(x, gamma, bias, eps)
    return _rms_norm_channel_last(x, gamma, bias, eps)


# ----------------------------------------------------------------------------
# Pure-JAX reference (mirrors the PyTorch forward)
# ----------------------------------------------------------------------------
def _reference(x, gamma, bias, channel_first, eps=_EPS):
    axis = 1 if channel_first else -1
    C = x.shape[axis]
    n = jnp.sqrt(jnp.sum(x * x, axis=axis, keepdims=True))
    y = x / jnp.maximum(n, eps)
    return y * (float(C) ** 0.5) * gamma + bias


# ----------------------------------------------------------------------------
if __name__ == "__main__":
    # --- channel_first=True, images=True (module defaults): x NCHW, gamma (C,1,1)
    B, C, H, W = 2, 4, 16, 16
    k1, k2 = jax.random.split(jax.random.PRNGKey(0))
    x = jax.random.normal(k1, (B, C, H, W), dtype=jnp.float32)
    gamma = (1.0 + 0.1 * jax.random.normal(k2, (C, 1, 1))).astype(jnp.float32)

    fwd_cf = jax.jit(functools.partial(rms_norm, channel_first=True))
    out = jax.block_until_ready(fwd_cf(x, gamma))
    ref = _reference(x, gamma, 0.0, channel_first=True)
    assert out.shape == x.shape and out.dtype == x.dtype, (out.shape, out.dtype)
    assert bool(jnp.all(jnp.isfinite(out)))
    assert bool(jnp.allclose(out, ref, atol=1e-5, rtol=1e-5)), \
        float(jnp.max(jnp.abs(out - ref)))

    # --- channel_first=True, images=False, bf16 input (native-dtype I/O path)
    Bv, Cv, T, Hv, Wv = 1, 96, 4, 8, 8
    k3, k4 = jax.random.split(jax.random.PRNGKey(1))
    xv = jax.random.normal(k3, (Bv, Cv, T, Hv, Wv), dtype=jnp.float32).astype(jnp.bfloat16)
    gv = (1.0 + 0.05 * jax.random.normal(k4, (Cv, 1, 1, 1))).astype(jnp.float32)
    outv = jax.block_until_ready(fwd_cf(xv, gv))
    refv = _reference(xv.astype(jnp.float32), gv, 0.0, channel_first=True)
    assert outv.shape == xv.shape and outv.dtype == jnp.bfloat16, (outv.shape, outv.dtype)
    assert bool(jnp.allclose(outv.astype(jnp.float32), refv, atol=3e-2, rtol=3e-2)), \
        float(jnp.max(jnp.abs(outv.astype(jnp.float32) - refv)))

    # --- channel_first=False with bias: x (..., D), gamma/bias (D,)
    D = 32
    x2 = jax.random.normal(jax.random.PRNGKey(3), (2, 8, 16, D), dtype=jnp.float32)
    g2 = (1.0 + 0.05 * jax.random.normal(jax.random.PRNGKey(4), (D,))).astype(jnp.float32)
    b2 = (0.01 * jax.random.normal(jax.random.PRNGKey(5), (D,))).astype(jnp.float32)

    fwd_cl = jax.jit(functools.partial(rms_norm, channel_first=False))
    out2 = jax.block_until_ready(fwd_cl(x2, g2, b2))
    ref2 = _reference(x2, g2, b2, channel_first=False)
    assert out2.shape == x2.shape and out2.dtype == x2.dtype, (out2.shape, out2.dtype)
    assert bool(jnp.allclose(out2, ref2, atol=1e-5, rtol=1e-5)), \
        float(jnp.max(jnp.abs(out2 - ref2)))

    print("KERNEL_OK")
</pallas_src>

<mosaic_0001>
module attributes {stable_mosaic.version = 11 : i64} {
  func.func @_rms_norm_cf_kernel(%arg0: i32, %arg1: i32, %arg2: memref<1x4x256xf32, #tpu.memory_space<vmem>>, %arg3: memref<1x4x1xf32, #tpu.memory_space<vmem>>, %arg4: memref<1x4x256xf32, #tpu.memory_space<vmem>>) attributes {dimension_semantics = [#tpu.dimension_semantics<parallel>, #tpu.dimension_semantics<parallel>], iteration_bounds = array<i64: 2, 1>, scalar_prefetch = 0 : i64, scratch_operands = 0 : i64, tpu.core_type = #tpu.core_type<tc>, window_params = [{transform_indices = @transform_0, window_bounds = array<i64: 1, 4, 256>}, {pipeline_mode = #tpu.pipeline_mode<synchronous>, transform_indices = @transform_1, window_bounds = array<i64: 1, 4, 1>}, {transform_indices = @transform_2, window_bounds = array<i64: 1, 4, 256>}]} {
    %c0 = arith.constant 0 : index
    %c0_0 = arith.constant 0 : index
    %c0_1 = arith.constant 0 : index
    %0 = vector.load %arg2[%c0, %c0_0, %c0_1] : memref<1x4x256xf32, #tpu.memory_space<vmem>>, vector<1x4x256xf32>
    %1 = arith.mulf %0, %0 : vector<1x4x256xf32>
    %cst = arith.constant dense<0.000000e+00> : vector<1x256xf32>
    %2 = vector.multi_reduction <add>, %1, %cst [1] : vector<1x4x256xf32> to vector<1x256xf32>
    %3 = vector.shape_cast %2 : vector<1x256xf32> to vector<1x1x256xf32>
    %cst_2 = arith.constant 1.000000e-24 : f32
    %4 = vector.broadcast %cst_2 : f32 to vector<1x1x256xf32>
    %5 = arith.maximumf %3, %4 : vector<1x1x256xf32>
    %6 = math.rsqrt %5 : vector<1x1x256xf32>
    %7 = vector.broadcast %6 : vector<1x1x256xf32> to vector<1x4x256xf32>
    %8 = arith.mulf %0, %7 : vector<1x4x256xf32>
    %c0_3 = arith.constant 0 : index
    %c0_4 = arith.constant 0 : index
    %c0_5 = arith.constant 0 : index
    %9 = vector.load %arg3[%c0_3, %c0_4, %c0_5] : memref<1x4x1xf32, #tpu.memory_space<vmem>>, vector<1x4x1xf32>
    %10 = vector.broadcast %9 : vector<1x4x1xf32> to vector<1x4x256xf32>
    %11 = arith.mulf %8, %10 : vector<1x4x256xf32>
    %c0_6 = arith.constant 0 : index
    %c0_7 = arith.constant 0 : index
    %c0_8 = arith.constant 0 : index
    %12 = vector.load %arg4[%c0_6, %c0_7, %c0_8] : memref<1x4x256xf32, #tpu.memory_space<vmem>>, vector<1x4x256xf32>
    tpu.vector_store %arg4[%c0_6, %c0_7, %c0_8], %11 {strides = array<i32>} : memref<1x4x256xf32, #tpu.memory_space<vmem>>, vector<1x4x256xf32>,
    return
  }
  func.func @transform_0(%arg0: i32, %arg1: i32) -> (i32, i32, i32) {
    %c0_i32 = arith.constant 0 : i32
    %c0_i32_0 = arith.constant 0 : i32
    return %arg0, %c0_i32, %arg1 : i32, i32, i32
  }
  func.func @transform_1(%arg0: i32, %arg1: i32) -> (i32, i32, i32) {
    %c0_i32 = arith.constant 0 : i32
    %c0_i32_0 = arith.constant 0 : i32
    %c0_i32_1 = arith.constant 0 : i32
    %c0_i32_2 = arith.constant 0 : i32
    return %c0_i32, %c0_i32_0, %c0_i32_1 : i32, i32, i32
  }
  func.func @transform_2(%arg0: i32, %arg1: i32) -> (i32, i32, i32) {
    %c0_i32 = arith.constant 0 : i32
    %c0_i32_0 = arith.constant 0 : i32
    return %arg0, %c0_i32, %arg1 : i32, i32, i32
  }
}

</mosaic_0001>

<llo_original>
// kernel: rms_norm.1
$region0: #{rms_norm.1}
  #allocation0 [shape = 'u32[]', space=smem, size = 0x4, offset = 0x4, fixed_abs, tag = 'smem constant byte address 0x4 - core index']
  #allocation1 [shape = 'u32[144,128]{1,0:T(1,128)}', space=vmem, size = 0x12000, scoped, tag = 'internal scratch']
  %s0 = inlined_call_operand.vmem [shape: f32[2,4,256], index: 0, kind: input, shape index: {}]
  %s1 = inlined_call_operand.vmem [shape: f32[1,4,1], index: 1, kind: input, shape index: {}]
  %s2 = inlined_call_operand.vmem [shape: f32[2,4,256], index: 2, kind: output, shape index: {}]
  %s3 = sld [smem:[#allocation0]]
  $region41: #{rms_norm.1} parent=0
    _
  %s5 = ssub.s32 1, %s3
  %s6 = scalar_select 0, %s5, %s3
  loop: start=0, step=1, limit=4
  $region2: #{rms_norm.1} parent=0 // loop_pre_header
    _
  $region3: #{rms_norm.1} parent=0 // loop_header
    %s8 = sphi 0, %s12
    %p9 = scmp.ge.s32.totalorder %s8, 4
    %s15 = sphi 0, %s27
    %s16 = sphi 0, %s23
    %s17 = sphi 0, %s15
    %s18 = sphi 0, %s16
    %s19 = sphi 0, %s17
    %s20 = sphi 0, %s18
    %s32 = sphi 0, %s34
    %s35 = sphi 0, %s32
    %s36 = sphi 0, %s35
    %s52 = sphi 0, %s36
    %s56 = sphi 0, %s56
    %s58 = sphi 0, %s56
    %s59 = sphi 0, %s58
    %s73 = sphi 0, %s59
    %s81 = sphi 0, %s83
    %s84 = sphi 0, %s81
    %s85 = sphi 0, %s84
    %s101 = sphi 0, %s85
  $region4: #{rms_norm.1} parent=0 // loop_header_branch
    %11 = sbr.rel (%p9) target = $region8
  $region5: #{rms_norm.1} parent=0 // loop_body
    %s13 = ssub.s32 %s8, 1
    %s14 = ssub.s32 %s8, 2
    %s21 = sadd.s32 1, %s16
    %p22 = scmp.ge.s32.totalorder %s21, 1
    %s23 = scalar_select %p22, 0, %s21
    %s24 = sadd.s32 1, %s15
    %s25 = scalar_select %p22, %s24, %s15
    %p26 = scmp.ge.s32.totalorder %s25, 2
    %s27 = scalar_select %p26, 0, %s25
    %s28 = ssub.s32 %s15, %s27
    %s29 = ssub.s32 %s16, %s23
    %s30 = sor.u32 %s28, %s29
    %p31 = scmp.eq.s32.totalorder %s30, 0
    %s33 = sadd.s32 %s32, 1
    %s34 = scalar_select %p31, %s32, %s33
    %p37 = pneg %p31
    %p38 = scmp.eq.s32.totalorder %s8, 1
    %p39 = por %p37, %p38
    %p40 = scmp.ne.s32.totalorder %s32, %s35
    %p41 = scmp.eq.s32.totalorder %s8, 0
    %p42 = por %p40, %p41
    %p43 = scmp.ne.s32.totalorder %s32, %s35
    %p44 = scmp.eq.s32.totalorder %s13, 1
    %p45 = por %p43, %p44
    %p46 = scmp.ne.s32.totalorder %s35, %s36
    %p47 = scmp.eq.s32.totalorder %s13, 0
    %p48 = por %p46, %p47
    %p49 = scmp.ne.s32.totalorder %s35, %s36
    %p50 = scmp.eq.s32.totalorder %s14, 1
    %p51 = por %p49, %p50
    %p53 = scmp.ne.s32.totalorder %s36, %s52
    %p54 = scmp.eq.s32.totalorder %s14, 0
    %p55 = por %p53, %p54
    %s57 = sadd.s32 %s56, 1
    %p60 = scmp.eq.s32.totalorder %s8, 1
    %p61 = scmp.ne.s32.totalorder %s56, %s58
    %p62 = scmp.eq.s32.totalorder %s8, 0
    %p63 = por %p61, %p62
    %p64 = scmp.ne.s32.totalorder %s56, %s58
    %p65 = scmp.eq.s32.totalorder %s13, 1
    %p66 = por %p64, %p65
    %p67 = scmp.ne.s32.totalorder %s58, %s59
    %p68 = scmp.eq.s32.totalorder %s13, 0
    %p69 = por %p67, %p68
    %p70 = scmp.ne.s32.totalorder %s58, %s59
    %p71 = scmp.eq.s32.totalorder %s14, 1
    %p72 = por %p70, %p71
    %p74 = scmp.ne.s32.totalorder %s59, %s73
    %p75 = scmp.eq.s32.totalorder %s14, 0
    %p76 = por %p74, %p75
    %s77 = ssub.s32 %s15, %s27
    %s78 = ssub.s32 %s16, %s23
    %s79 = sor.u32 %s77, %s78
    %p80 = scmp.eq.s32.totalorder %s79, 0
    %s82 = sadd.s32 %s81, 1
    %s83 = scalar_select %p80, %s81, %s82
    %p86 = pneg %p80
    %p87 = scmp.eq.s32.totalorder %s8, 1
    %p88 = por %p86, %p87
    %p89 = scmp.ne.s32.totalorder %s81, %s84
    %p90 = scmp.eq.s32.totalorder %s8, 0
    %p91 = por %p89, %p90
    %p92 = scmp.ne.s32.totalorder %s81, %s84
    %p93 = scmp.eq.s32.totalorder %s13, 1
    %p94 = por %p92, %p93
    %p95 = scmp.ne.s32.totalorder %s84, %s85
    %p96 = scmp.eq.s32.totalorder %s13, 0
    %p97 = por %p95, %p96
    %p98 = scmp.ne.s32.totalorder %s84, %s85
    %p99 = scmp.eq.s32.totalorder %s14, 1
    %p100 = por %p98, %p99
    %p102 = scmp.ne.s32.totalorder %s85, %s101
    %p103 = scmp.eq.s32.totalorder %s14, 0
    %p104 = por %p102, %p103
    %p105 = scmp.le.s32.totalorder 1, %s8
    %p106 = scmp.lt.s32.totalorder %s8, 3
    %p107 = pnand %p105, %p106
    %p108 = pneg %p107
    // Predicated region
    $region9: #{rms_norm.1} parent=5 // pred_check
      _
    $region10: #{rms_norm.1} parent=5 // pred_check_branch
      %110 = sbr.rel (%p107) target = $region12
    $region11: #{rms_norm.1} parent=5 // pred_region
      %s111 = ssub.s32 %s8, 1
      // Predicated region
      $region13: #{rms_norm.1} parent=11 // pred_check
        %p112 = pneg %p69
      $region14: #{rms_norm.1} parent=11 // pred_check_branch
        %114 = sbr.rel (%p112) target = $region16
      $region15: #{rms_norm.1} parent=11 // pred_region
        _
      $region16: #{rms_norm.1} parent=11 // pred_fallthru
        _
    $region12: #{rms_norm.1} parent=5 // pred_fallthru
      _
    %p115 = scmp.lt.s32.totalorder %s8, 2
    // Predicated region
    $region17: #{rms_norm.1} parent=5 // pred_check
      %p116 = pneg %p115
    $region18: #{rms_norm.1} parent=5 // pred_check_branch
      %118 = sbr.rel (%p116) target = $region20
    $region19: #{rms_norm.1} parent=5 // pred_region
      // Predicated region
      $region21: #{rms_norm.1} parent=19 // pred_check
        %p119 = pneg %p42
      $region22: #{rms_norm.1} parent=19 // pred_check_branch
        %121 = sbr.rel (%p119) target = $region24
      $region23: #{rms_norm.1} parent=19 // pred_region
        %s122 = smul.u32 2, %s16
        %p123 = scmp.lt.s32.totalorder %s15, 1
        %s124 = scalar_select %p123, %s15, 1
        %p125 = scmp.lt.s32.totalorder %s122, 1
        %s126 = scalar_select %p125, %s122, 1
        %s127 = smul.addr %s124, 2
        %s128 = sadd.s32 %s126, %s127
        %s129 = smul.addr %s128, 4
        %s130 = scalar_lea.vmem %s0, %s129
        %s131 = smul.u32 2, %s16
      $region24: #{rms_norm.1} parent=19 // pred_fallthru
        _
    $region20: #{rms_norm.1} parent=5 // pred_fallthru
      _
    %p132 = scmp.le.s32.totalorder 1, %s8
    %p133 = scmp.lt.s32.totalorder %s8, 3
    %p134 = pnand %p132, %p133
    %p135 = pneg %p134
    // Predicated region
    $region25: #{rms_norm.1} parent=5 // pred_check
      _
    $region26: #{rms_norm.1} parent=5 // pred_check_branch
      %137 = sbr.rel (%p134) target = $region28
    $region27: #{rms_norm.1} parent=5 // pred_region
      %s138 = ssub.s32 %s8, 1
      %s139 = smul.u32 2, %s18
      %p140 = scmp.lt.s32.totalorder %s17, 1
      %s141 = scalar_select %p140, %s17, 1
      %p142 = scmp.lt.s32.totalorder %s139, 1
      %s143 = scalar_select %p142, %s139, 1
      %s144 = smul.addr %s141, 2
      %s145 = sadd.s32 %s143, %s144
      %s146 = smul.addr %s145, 4
      %s147 = scalar_lea.vmem %s0, %s146
      %p148 = pneg %p48
      %p149 = pneg %p45
      %p150 = pneg %p69
      %p151 = pneg %p66
      %p152 = pneg %p97
      %p153 = pneg %p94
      %s154 = smul.u32 2, %s18
      %p155 = scmp.lt.s32.totalorder %s17, 1
      %s156 = scalar_select %p155, %s17, 1
      %p157 = scmp.lt.s32.totalorder %s154, 1
      %s158 = scalar_select %p157, %s154, 1
      %s159 = smul.addr %s156, 2
      %s160 = sadd.s32 %s158, %s159
      %s161 = smul.addr %s160, 4
      %s162 = scalar_lea.vmem %s2, %s161
      %s163 = smul.u32 2, %s18
      %p164 = scmp.lt.s32.totalorder %s17, 1
      %s165 = scalar_select %p164, %s17, 1
      %p166 = scmp.lt.s32.totalorder %s163, 1
      %s167 = scalar_select %p166, %s163, 1
      %s168 = smul.addr %s165, 2
      %s169 = sadd.s32 %s167, %s168
      %s170 = smul.addr %s169, 4
      %s171 = scalar_lea.vmem %s0, %s170
      %s172 = smul.u32 2, %s18
      %s173 = smul.u32 2, %s18
      %p174 = scmp.lt.s32.totalorder %s17, 1
      %s175 = scalar_select %p174, %s17, 1
      %p176 = scmp.lt.s32.totalorder %s173, 1
      %s177 = scalar_select %p176, %s173, 1
      %s178 = smul.addr %s175, 2
      %s179 = sadd.s32 %s177, %s178
      %s180 = smul.addr %s179, 4
      %s181 = scalar_lea.vmem %s2, %s180
      %s182 = smul.u32 2, %s18
      %v183 = vld [vmem:[%s171] sm:$0xff]
      %v184 = vmul.f32 %v183, %v183
      %v186 = vcombine.high %v184, %v184
      %vm188 = vcmask 1043456
      %v189 = vsel %vm188, %v184, 0.0
      %v190 = vrot.slane %v189, 4
      %v191 = vadd.f32 %v189, %v190
      %v192 = vrot.slane %v191, 2
      %v193 = vadd.f32 %v191, %v192
      %v194 = vrot.slane %v193, 1
      %v195 = vadd.f32 %v193, %v194
      %v196 = vsel %vm188, %v186, 0.0
      %v197 = vrot.slane %v196, 4
      %v198 = vadd.f32 %v196, %v197
      %v199 = vrot.slane %v198, 2
      %v200 = vadd.f32 %v198, %v199
      %v201 = vrot.slane %v200, 1
      %v202 = vadd.f32 %v200, %v201
      %v203 = vmax.f32 %v195, 1e-24
      %v204 = vmax.f32 %v202, 1e-24
      %v205 = vrsqrt.pop %v203
      %v206 = vrsqrt.pop %v204
      %v209 = vcombine.low %v205, %v206
      %v211 = vmul.f32 %v183, %v209
      %v212 = vld [vmem:[%s1] sm:$0xf]
      %214 = vset.pattern.permute.xlu0 0
      %215 = vperm.xlu0 %214, %v212
      %v216 = vpop.permute.xlu0 %215
      %v218 = vunpack.c.l.s4 839922192
      %v219 = vunpack.c.0.s8 %v218
      %v220 = vlaneseq
      %v221 = vshrl.u32 %v220, 7
      %v222 = vsub.s32 %v219, %v221
      %v223 = vrot.slane %v216, %v222
      %v225 = vmul.f32 %v211, %v223
      %226 = vst [vmem:[%s181] sm:$0xff] %v225
      %s227 = smul.u32 2, %s18
      %p228 = scmp.lt.s32.totalorder %s17, 1
      %s229 = scalar_select %p228, %s17, 1
      %p230 = scmp.lt.s32.totalorder %s227, 1
      %s231 = scalar_select %p230, %s227, 1
      %s232 = smul.addr %s229, 2
      %s233 = sadd.s32 %s231, %s232
      %s234 = smul.addr %s233, 4
      %s235 = scalar_lea.vmem %s2, %s234
      // Predicated region
      $region29: #{rms_norm.1} parent=27 // pred_check
        %p236 = pneg %p94
      $region30: #{rms_norm.1} parent=27 // pred_check_branch
        %238 = sbr.rel (%p236) target = $region32
      $region31: #{rms_norm.1} parent=27 // pred_region
        %s239 = smul.u32 2, %s18
      $region32: #{rms_norm.1} parent=27 // pred_fallthru
        _
    $region28: #{rms_norm.1} parent=5 // pred_fallthru
      _
    %p240 = scmp.le.s32.totalorder 2, %s8
    // Predicated region
    $region33: #{rms_norm.1} parent=5 // pred_check
      %p241 = pneg %p240
    $region34: #{rms_norm.1} parent=5 // pred_check_branch
      %243 = sbr.rel (%p241) target = $region36
    $region35: #{rms_norm.1} parent=5 // pred_region
      %s244 = ssub.s32 %s8, 2
      // Predicated region
      $region37: #{rms_norm.1} parent=35 // pred_check
        %p245 = pneg %p100
      $region38: #{rms_norm.1} parent=35 // pred_check_branch
        %247 = sbr.rel (%p245) target = $region40
      $region39: #{rms_norm.1} parent=35 // pred_region
        %s248 = smul.u32 2, %s20
        %p249 = scmp.lt.s32.totalorder %s19, 1
        %s250 = scalar_select %p249, %s19, 1
        %p251 = scmp.lt.s32.totalorder %s248, 1
        %s252 = scalar_select %p251, %s248, 1
        %s253 = smul.addr %s250, 2
        %s254 = sadd.s32 %s252, %s253
        %s255 = smul.addr %s254, 4
        %s256 = scalar_lea.vmem %s2, %s255
      $region40: #{rms_norm.1} parent=35 // pred_fallthru
        _
    $region36: #{rms_norm.1} parent=5 // pred_fallthru
      _
  $region6: #{rms_norm.1} parent=0 // loop_footer
    %s12 = sadd.s32 1, %s8
  $region7: #{rms_norm.1} parent=0 // loop_footer_branch
    %7 = sbr.rel target = $region3
  $region8: #{rms_norm.1} parent=0 // loop_exit
    _

</llo_original>
